<compile_context>
chip_gen: v5e
topology: v5e:2x2
jax: 0.10.0
libtpu: 0.0.40
codegen_flags: <defaults>
</compile_context>

<pallas_src>
import functools

import jax
import jax.numpy as jnp
from jax.experimental import pallas as pl
from jax.experimental.pallas import tpu as pltpu


def _fmp_windowed_kernel(x_ref, w_ref, b_ref, o_ref, *, kernel_size, c_in):
    """Fast path: K == S and T == T_out*K (non-overlapping windows tiling T exactly).

    x_ref: (block_rows, K*C_in) -- row r is pooling window r, its K frames contiguous in lanes
    w_ref: (C_in, H_pad)        -- resident across grid steps (constant index_map)
    b_ref: (1, H_pad)           -- resident, f32
    o_ref: (block_rows, H_pad)  -- lane-dense output tile
    """
    K = kernel_size
    w = w_ref[...]
    pooled = None
    for j in range(K):  # K is a small static constant -> unrolled
        # Contiguous lane slice selects in-window phase j, so pooling never touches the
        # sublane axis (no cross-sublane relayout) and the live f32 intermediate is only
        # (block_rows, H_pad) instead of (block_rows*K, H_pad).
        xj = x_ref[:, j * c_in:(j + 1) * c_in]
        hj = jnp.dot(xj, w, preferred_element_type=jnp.float32)
        pooled = hj if pooled is None else jnp.maximum(pooled, hj)
    # Bias after pooling: max_j(h_j + b) == max_j(h_j) + b (bias is constant over time).
    o_ref[...] = (pooled + b_ref[...]).astype(o_ref.dtype)


def _fmp_general_kernel(x_ref, w_ref, b_ref, o_ref, *, kernel_size, stride, t_out):
    """General path (K != S or ragged tail): one batch element per grid step.

    x_ref: (1, T, C_in); w_ref: (C_in, H_pad); b_ref: (1, H_pad); o_ref: (1, t_out, H_pad).
    """
    K, S = kernel_size, stride
    h = jnp.dot(x_ref[0], w_ref[...], preferred_element_type=jnp.float32)  # (T, H_pad)
    span = (t_out - 1) * S + 1
    pooled = h[0:span:S, :]
    for j in range(1, K):
        pooled = jnp.maximum(pooled, h[j:j + span:S, :])
    # Write straight into the output ref -- no per-batch concatenate.
    o_ref[0] = (pooled + b_ref[...]).astype(o_ref.dtype)


def _pick_block_rows(total_rows, row_in_bytes, sublane,
                     target_rows=512, max_tile_bytes=4 * 1024 * 1024):
    """Rows (pool windows) per grid step for the fast path.

    Goals:
      * multiple of `sublane` (8 for f32, 16 for bf16) or the full extent -- (8,128) rule.
      * >= 2 grid steps once there is enough work, so double-buffering hides the HBM DMA of a
        bandwidth-bound kernel and v7x's two TensorCores both get "parallel" steps.
      * tiles <= ~target_rows rows and <= max_tile_bytes of x per buffer so double-buffered
        x/out tiles stay far inside the 32 MiB scoped-VMEM default (v7x physical VMEM: 64 MiB).
    """
    if total_rows % sublane != 0:
        return total_rows  # full-extent block is always layout-legal
    rows = total_rows
    while (rows % 2 == 0 and (rows // 2) % sublane == 0
           and (rows > target_rows or rows * row_in_bytes > max_tile_bytes)):
        rows //= 2
    return rows


def frame_max_pool(x, weight, bias, *, kernel_size, stride,
                   block_rows=None, compute_dtype=None):
    """FrameMaxPool forward.

    x: (B, T, C_in); weight: (H, C_in) [PyTorch Conv1d weight (H, C_in, 1) squeezed]; bias: (H,).
    Returns (B, T_out, H) with T_out = (T - kernel_size)//stride + 1.
    """
    B, T, C_in = x.shape
    H = weight.shape[0]
    K, S = kernel_size, stride
    t_out = (T - K) // S + 1
    out_dtype = x.dtype

    # ---- lane-dense projection dimension: pad H to a multiple of 128 lanes -------------------
    H_pad = max(128, ((H + 127) // 128) * 128)
    w_t = weight.T                                   # (C_in, H): kernel computes x @ W^T
    b_f32 = bias.astype(jnp.float32)                 # epilogue add stays f32 (v5e: no bf16 VPU)
    if H_pad != H:
        w_t = jnp.pad(w_t, ((0, 0), (0, H_pad - H)))
        b_f32 = jnp.pad(b_f32, (0, H_pad - H))
    b2 = b_f32.reshape(1, H_pad)

    # ---- optional bf16 inputs: halves HBM bytes of the dominant x stream (v6e/v7x) -----------
    if compute_dtype is not None:
        x = x.astype(compute_dtype)
        w_t = w_t.astype(compute_dtype)
    itemsize = jnp.dtype(x.dtype).itemsize
    sublane = 8 if itemsize == 4 else (16 if itemsize == 2 else 32)

    bytes_accessed = (B * T * C_in * itemsize                                   # x
                      + C_in * H_pad * itemsize                                 # weight
                      + H_pad * 4                                               # bias
                      + B * t_out * H_pad * jnp.dtype(out_dtype).itemsize)      # out
    cost = pl.CostEstimate(flops=2 * B * T * C_in * H_pad,
                           transcendentals=0,
                           bytes_accessed=bytes_accessed)

    fast_path = (S == K) and (T == t_out * K)

    if fast_path:
        total_rows = B * t_out
        if block_rows is None:
            block_rows = _pick_block_rows(total_rows, K * C_in * itemsize, sublane)
        assert total_rows % block_rows == 0, "block_rows must divide B*T_out"
        assert block_rows == total_rows or block_rows % sublane == 0, (
            "block_rows must be a multiple of the sublane tile (or the full extent)")

        # Free reshape: row b*T_out + to holds the K frames of pooling window (b, to).
        x2 = x.reshape(total_rows, K * C_in)

        kernel = functools.partial(_fmp_windowed_kernel, kernel_size=K, c_in=C_in)
        out2 = pl.pallas_call(
            kernel,
            out_shape=jax.ShapeDtypeStruct((total_rows, H_pad), out_dtype),
            grid_spec=pltpu.PrefetchScalarGridSpec(
                num_scalar_prefetch=0,
                grid=(total_rows // block_rows,),
                in_specs=[
                    pl.BlockSpec((block_rows, K * C_in), lambda i: (i, 0)),
                    # Constant index_map -> weight / bias stay resident across grid steps.
                    pl.BlockSpec((C_in, H_pad), lambda i: (0, 0)),
                    pl.BlockSpec((1, H_pad), lambda i: (0, 0)),
                ],
                out_specs=pl.BlockSpec((block_rows, H_pad), lambda i: (i, 0)),
            ),
            compiler_params=pltpu.CompilerParams(
                dimension_semantics=("parallel",),  # shards across v7x's 2 TCs when grid >= 2
            ),
            cost_estimate=cost,
        )(x2, w_t, b2)
        out = out2.reshape(B, t_out, H_pad)
    else:
        # General K/S: windows may overlap or leave a ragged tail -> pool per batch element.
        # 3-D blocks with trailing dims equal to the full array extents avoid any sublane-
        # multiple constraint on t_out / T.
        kernel = functools.partial(_fmp_general_kernel, kernel_size=K, stride=S, t_out=t_out)
        out = pl.pallas_call(
            kernel,
            out_shape=jax.ShapeDtypeStruct((B, t_out, H_pad), out_dtype),
            grid_spec=pltpu.PrefetchScalarGridSpec(
                num_scalar_prefetch=0,
                grid=(B,),
                in_specs=[
                    pl.BlockSpec((1, T, C_in), lambda b: (b, 0, 0)),
                    pl.BlockSpec((C_in, H_pad), lambda b: (0, 0)),
                    pl.BlockSpec((1, H_pad), lambda b: (0, 0)),
                ],
                out_specs=pl.BlockSpec((1, t_out, H_pad), lambda b: (b, 0, 0)),
            ),
            compiler_params=pltpu.CompilerParams(
                dimension_semantics=("parallel",),
            ),
            cost_estimate=cost,
        )(x, w_t, b2)

    return out[..., :H]  # drop zero-padded lanes (no-op when H is already a multiple of 128)


def _reference(x, weight, bias, *, kernel_size, stride):
    # Pure-JAX reference mirroring the PyTorch module.
    h = jnp.einsum("btc,hc->bth", x, weight) + bias               # Conv1d k=1
    t_out = (x.shape[1] - kernel_size) // stride + 1
    span = (t_out - 1) * stride + 1
    out = h[:, 0:span:stride, :]
    for j in range(1, kernel_size):
        out = jnp.maximum(out, h[:, j:j + span:stride, :])
    return out


if __name__ == "__main__":
    # config = {'input_size': 32, 'hidden_size': 32, 'kernel_size': 2, 'stride': 2}
    B, T, C_IN, HID = 2, 8, 32, 32
    K, S = 2, 2

    key = jax.random.PRNGKey(0)
    kx, kw, kb = jax.random.split(key, 3)

    x = jax.random.normal(kx, (B, T, C_IN), dtype=jnp.float32)
    weight = jax.random.normal(kw, (HID, C_IN), dtype=jnp.float32) * 0.1  # Conv1d (H, C_in, 1) squeezed
    bias = jax.random.normal(kb, (HID,), dtype=jnp.float32) * 0.1

    # Fast path (K == S, windows tile T exactly) -- matches the module's demo config.
    out = frame_max_pool(x, weight, bias, kernel_size=K, stride=S)
    out = jax.block_until_ready(out)
    ref = _reference(x, weight, bias, kernel_size=K, stride=S)
    assert out.shape == (B, (T - K) // S + 1, HID), out.shape
    assert jnp.allclose(out, ref, atol=1e-5, rtol=1e-5), float(jnp.max(jnp.abs(out - ref)))

    # General fallback path (K != S, overlapping windows + ragged tail).
    out_g = frame_max_pool(x, weight, bias, kernel_size=3, stride=2)
    out_g = jax.block_until_ready(out_g)
    ref_g = _reference(x, weight, bias, kernel_size=3, stride=2)
    assert out_g.shape == ref_g.shape, (out_g.shape, ref_g.shape)
    assert jnp.allclose(out_g, ref_g, atol=1e-5, rtol=1e-5), float(jnp.max(jnp.abs(out_g - ref_g)))

    print("KERNEL_OK")
</pallas_src>

<mosaic_0001>
module attributes {stable_mosaic.version = 11 : i64} {
  func.func @_fmp_windowed_kernel(%arg0: i32, %arg1: memref<8x64xf32, #tpu.memory_space<vmem>>, %arg2: memref<32x128xf32, #tpu.memory_space<vmem>>, %arg3: memref<1x128xf32, #tpu.memory_space<vmem>>, %arg4: memref<8x128xf32, #tpu.memory_space<vmem>>) attributes {dimension_semantics = [#tpu.dimension_semantics<parallel>], iteration_bounds = array<i64: 1>, scalar_prefetch = 0 : i64, scratch_operands = 0 : i64, tpu.core_type = #tpu.core_type<tc>, window_params = [{transform_indices = @transform_0, window_bounds = array<i64: 8, 64>}, {pipeline_mode = #tpu.pipeline_mode<synchronous>, transform_indices = @transform_1, window_bounds = array<i64: 32, 128>}, {pipeline_mode = #tpu.pipeline_mode<synchronous>, transform_indices = @transform_2, window_bounds = array<i64: 1, 128>}, {transform_indices = @transform_3, window_bounds = array<i64: 8, 128>}]} {
    %c0 = arith.constant 0 : index
    %c0_0 = arith.constant 0 : index
    %0 = vector.load %arg2[%c0, %c0_0] : memref<32x128xf32, #tpu.memory_space<vmem>>, vector<32x128xf32>
    %c0_1 = arith.constant 0 : index
    %c0_2 = arith.constant 0 : index
    %1 = vector.load %arg1[%c0_1, %c0_2] : memref<8x64xf32, #tpu.memory_space<vmem>>, vector<8x32xf32>
    %cst = arith.constant dense<0.000000e+00> : vector<8x128xf32>
    %2 = tpu.matmul %1, %0, %cst {dimension_numbers = #tpu.dot_dimension_numbers<[1], [0], [0], [1], [0, 0, 1, 1], [], []>} : vector<8x32xf32>, vector<32x128xf32>, vector<8x128xf32> -> vector<8x128xf32>
    %c0_3 = arith.constant 0 : index
    %c32 = arith.constant 32 : index
    %3 = vector.load %arg1[%c0_3, %c32] : memref<8x64xf32, #tpu.memory_space<vmem>>, vector<8x32xf32>
    %cst_4 = arith.constant dense<0.000000e+00> : vector<8x128xf32>
    %4 = tpu.matmul %3, %0, %cst_4 {dimension_numbers = #tpu.dot_dimension_numbers<[1], [0], [0], [1], [0, 0, 1, 1], [], []>} : vector<8x32xf32>, vector<32x128xf32>, vector<8x128xf32> -> vector<8x128xf32>
    %5 = arith.maximumf %2, %4 : vector<8x128xf32>
    %c0_5 = arith.constant 0 : index
    %c0_6 = arith.constant 0 : index
    %6 = vector.load %arg3[%c0_5, %c0_6] : memref<1x128xf32, #tpu.memory_space<vmem>>, vector<1x128xf32>
    %7 = vector.broadcast %6 : vector<1x128xf32> to vector<8x128xf32>
    %8 = arith.addf %5, %7 : vector<8x128xf32>
    %c0_7 = arith.constant 0 : index
    %c0_8 = arith.constant 0 : index
    %9 = vector.load %arg4[%c0_7, %c0_8] : memref<8x128xf32, #tpu.memory_space<vmem>>, vector<8x128xf32>
    tpu.vector_store %arg4[%c0_7, %c0_8], %8 {strides = array<i32>} : memref<8x128xf32, #tpu.memory_space<vmem>>, vector<8x128xf32>,
    return
  }
  func.func @transform_0(%arg0: i32) -> (i32, i32) {
    %c0_i32 = arith.constant 0 : i32
    %c0_i32_0 = arith.constant 0 : i32
    return %arg0, %c0_i32 : i32, i32
  }
  func.func @transform_1(%arg0: i32) -> (i32, i32) {
    %c0_i32 = arith.constant 0 : i32
    %c0_i32_0 = arith.constant 0 : i32
    %c0_i32_1 = arith.constant 0 : i32
    return %c0_i32, %c0_i32_0 : i32, i32
  }
  func.func @transform_2(%arg0: i32) -> (i32, i32) {
    %c0_i32 = arith.constant 0 : i32
    %c0_i32_0 = arith.constant 0 : i32
    %c0_i32_1 = arith.constant 0 : i32
    return %c0_i32, %c0_i32_0 : i32, i32
  }
  func.func @transform_3(%arg0: i32) -> (i32, i32) {
    %c0_i32 = arith.constant 0 : i32
    %c0_i32_0 = arith.constant 0 : i32
    return %arg0, %c0_i32 : i32, i32
  }
}

</mosaic_0001>

<llo_original>
// kernel: tpu_custom_call.1
$region0: #{tpu_custom_call.1}
  #allocation0 [shape = 'u32[]', space=smem, size = 0x4, offset = 0x4, fixed_abs, tag = 'smem constant byte address 0x4 - core index']
  #allocation1 [shape = 'u32[72,128]{1,0:T(1,128)}', space=vmem, size = 0x9000, scoped, tag = 'internal scratch']
  %s0 = inlined_call_operand.hbm [shape: f32[8,64], index: 0, kind: input, shape index: {}]
  %s1 = inlined_call_operand.hbm [shape: f32[32,128], index: 1, kind: input, shape index: {}]
  %s2 = inlined_call_operand.vmem [shape: f32[1,128], index: 2, kind: input, shape index: {}]
  %s3 = inlined_call_operand.hbm [shape: f32[8,128], index: 3, kind: output, shape index: {}]
  %s4 = sld [smem:[#allocation0]]
  $region30: #{tpu_custom_call.1} parent=0
    _
  %s6 = ssub.s32 1, %s4
  %s7 = scalar_select 0, %s6, %s4
  $region1: #{tpu_custom_call.1} parent=0
    #allocation2 [shape = 'u8[4096]{0}', space=vmem, size = 0x1000, scoped, tag = 'input window, operand 0, single buffered']
    #allocation3 [shape = 's32[1]{0}', space=sflag, size = 0x4, scoped, tag = 'scoped memory for tpu_custom_call.1']
    #allocation4 [shape = 's32[1]{0}', space=sflag, size = 0x4, scoped, tag = 'scoped memory for tpu_custom_call.1']
    #allocation5 [shape = 'u8[16384]{0}', space=vmem, size = 0x4000, scoped, tag = 'input window, operand 1, single buffered']
    #allocation6 [shape = 's32[1]{0}', space=sflag, size = 0x4, scoped, tag = 'scoped memory for tpu_custom_call.1']
    #allocation7 [shape = 'u8[4096]{0}', space=vmem, size = 0x1000, scoped, tag = 'output window, operand 0, single buffered']
    %8 = vsyncpa [#allocation3], 0
    %9 = vsyncpa [#allocation6], 0
    %10 = vsyncpa [#allocation4], 0
    // Predicated region
    $region2: #{tpu_custom_call.1} parent=1 // pred_check
      _
    $region3: #{tpu_custom_call.1} parent=1 // pred_check_branch
      %12 = sbr.rel (0) target = $region5
    $region4: #{tpu_custom_call.1} parent=1 // pred_region
      %14 = vsyncadd [#allocation3], 0
      %s16 = sshll.u32 %s0, 4
      %s17 = int_to_ptr.hbm [resolvable:$true] %s16
      %s18 = sshll.u32 [#allocation2], 4
      %s19 = int_to_ptr.vmem [resolvable:$true] %s18
      %21 = dma.hbm_to_vmem [thread:$0]  %s17, 128, %s19, [#allocation3]
    $region5: #{tpu_custom_call.1} parent=1 // pred_fallthru
      _
    // Predicated region
    $region6: #{tpu_custom_call.1} parent=1 // pred_check
      _
    $region7: #{tpu_custom_call.1} parent=1 // pred_check_branch
      %23 = sbr.rel (0) target = $region9
    $region8: #{tpu_custom_call.1} parent=1 // pred_region
      %25 = vsyncadd [#allocation6], 0
      %s26 = sshll.u32 %s1, 4
      %s27 = int_to_ptr.hbm [resolvable:$true] %s26
      %s28 = sshll.u32 [#allocation5], 4
      %s29 = int_to_ptr.vmem [resolvable:$true] %s28
      %34 = dma.hbm_to_vmem [thread:$0]  %s27, 512, %s29, [#allocation6], 128, 128, 8
    $region9: #{tpu_custom_call.1} parent=1 // pred_fallthru
      _
    // Predicated region
    $region10: #{tpu_custom_call.1} parent=1 // pred_check
      _
    $region11: #{tpu_custom_call.1} parent=1 // pred_check_branch
      %36 = sbr.rel (0) target = $region13
    $region12: #{tpu_custom_call.1} parent=1 // pred_region
      _
    $region13: #{tpu_custom_call.1} parent=1 // pred_fallthru
      _
    // Predicated region
    $region14: #{tpu_custom_call.1} parent=1 // pred_check
      _
    $region15: #{tpu_custom_call.1} parent=1 // pred_check_branch
      %38 = sbr.rel (0) target = $region17
    $region16: #{tpu_custom_call.1} parent=1 // pred_region
      %40 = dma.done [#allocation3], 128
    $region17: #{tpu_custom_call.1} parent=1 // pred_fallthru
      _
    // Predicated region
    $region18: #{tpu_custom_call.1} parent=1 // pred_check
      _
    $region19: #{tpu_custom_call.1} parent=1 // pred_check_branch
      %42 = sbr.rel (0) target = $region21
    $region20: #{tpu_custom_call.1} parent=1 // pred_region
      %44 = dma.done [#allocation6], 512
    $region21: #{tpu_custom_call.1} parent=1 // pred_fallthru
      _
    %v45 = vld [vmem:[#allocation5] sm:$0xff]
    %v46 = vld [vmem:[#allocation5 + $0x8] sm:$0xff]
    %v47 = vld [vmem:[#allocation5 + $0x10] sm:$0xff]
    %v48 = vld [vmem:[#allocation5 + $0x18] sm:$0xff]
    %v49 = vld [vmem:[#allocation2] sm:$0xff]
    %vm50 = vcmask 261120
    %v52 = vsel %vm50, %v49, 0
    %54 = vmatpush.msra.mxu0 0.0
    %55 = vmatpush.msra.mxu0 0.0
    %56 = vmatpush.msra.mxu0 0.0
    %57 = vmatpush.msra.mxu0 0.0
    %58 = vmatpush.msra.mxu0 0.0
    %59 = vmatpush.msra.mxu0 0.0
    %60 = vmatpush.msra.mxu0 0.0
    %61 = vmatpush.msra.mxu0 0.0
    %62 = vmatpush.msra.mxu0 0.0
    %63 = vmatpush.msra.mxu0 0.0
    %64 = vmatpush.msra.mxu0 0.0
    %65 = vmatpush.msra.mxu0 0.0
    %66 = vmatpush.msra.mxu0 %v48
    %67 = vmatpush.msra.mxu0 %v47
    %68 = vmatpush.msra.mxu0 %v46
    %69 = vmatpush.msra.mxu0 %v45
    %70 = vmatmul.f32.gmra.mxu0 %v52
    %v71 = vpop.f32.mrf.mxu0
    %v72 = vadd.f32 0.0, %v71
    %73 = vdwg.mxu0
    %74 = vrot.lane.b32.xlu0 %v49, 96
    %v75 = vpop.permute.xlu0 %74
    %v76 = vsel %vm50, %v75, 0
    %78 = vmatpush.msra.mxu0 0.0
    %79 = vmatpush.msra.mxu0 0.0
    %80 = vmatpush.msra.mxu0 0.0
    %81 = vmatpush.msra.mxu0 0.0
    %82 = vmatpush.msra.mxu0 0.0
    %83 = vmatpush.msra.mxu0 0.0
    %84 = vmatpush.msra.mxu0 0.0
    %85 = vmatpush.msra.mxu0 0.0
    %86 = vmatpush.msra.mxu0 0.0
    %87 = vmatpush.msra.mxu0 0.0
    %88 = vmatpush.msra.mxu0 0.0
    %89 = vmatpush.msra.mxu0 0.0
    %90 = vmatpush.msra.mxu0 %v48
    %91 = vmatpush.msra.mxu0 %v47
    %92 = vmatpush.msra.mxu0 %v46
    %93 = vmatpush.msra.mxu0 %v45
    %94 = vmatmul.f32.gmra.mxu0 %v76
    %v95 = vpop.f32.mrf.mxu0
    %v96 = vadd.f32 0.0, %v95
    %97 = vdwg.mxu0
    %v98 = vmax.f32 %v72, %v96
    %v99 = vld [vmem:[%s2] sm:$0x1]
    %v101 = vperm.slane %v99, 0
    %v103 = vadd.f32 %v98, %v101
    %104 = vst [vmem:[#allocation7] sm:$0xff] %v103
    // Predicated region
    $region22: #{tpu_custom_call.1} parent=1 // pred_check
      _
    $region23: #{tpu_custom_call.1} parent=1 // pred_check_branch
      %106 = sbr.rel (0) target = $region25
    $region24: #{tpu_custom_call.1} parent=1 // pred_region
      %108 = vsyncadd [#allocation4], 0
      %s110 = sshll.u32 [#allocation7], 4
      %s111 = int_to_ptr.vmem [resolvable:$true] %s110
      %s112 = sshll.u32 %s3, 4
      %s113 = int_to_ptr.hbm [resolvable:$true] %s112
      %115 = dma.vmem_to_hbm [thread:$0]  %s111, 128, %s113, [#allocation4]
    $region25: #{tpu_custom_call.1} parent=1 // pred_fallthru
      _
    // Predicated region
    $region26: #{tpu_custom_call.1} parent=1 // pred_check
      _
    $region27: #{tpu_custom_call.1} parent=1 // pred_check_branch
      %117 = sbr.rel (0) target = $region29
    $region28: #{tpu_custom_call.1} parent=1 // pred_region
      %119 = dma.done [#allocation4], 128
    $region29: #{tpu_custom_call.1} parent=1 // pred_fallthru
      _
    %120 = vsyncpa [#allocation3], 1
    %121 = vsyncpa [#allocation6], 1
    %122 = vsyncpa [#allocation4], 1

</llo_original>
